<compile_context>
chip_gen: v7x
topology: tpu7x:2x2x1
jax: 0.10.0
libtpu: 0.0.40
codegen_flags: <defaults>
</compile_context>

<pallas_src>
import jax
import jax.numpy as jnp
from jax.experimental import pallas as pl
from jax.experimental.pallas import tpu as pltpu

HIDDEN = 64


def _mlp_kernel(obs_ref, w1_ref, b1_ref, w2_ref, b2_ref, w3_ref, b3_ref, out_ref):
    # obs arrives as f32 (no wrapper-side cast/copy); bf16 cast is in-kernel VPU work.
    obs = obs_ref[...].astype(jnp.bfloat16)
    # Layer 1: [TB, in]bf16 @ [in, H]bf16 -> f32 acc; bias + tanh in f32.
    h1 = jnp.tanh(
        jnp.dot(obs, w1_ref[...], preferred_element_type=jnp.float32) + b1_ref[...]
    )
    # Layer 2: [TB, H] @ [H, H] (bf16 operands, f32 acc) -> tanh.
    h2 = jnp.tanh(
        jnp.dot(h1.astype(jnp.bfloat16), w2_ref[...],
                preferred_element_type=jnp.float32)
        + b2_ref[...]
    )
    # Layer 3 (logits head, padded to 8 lane columns): [TB, H] @ [H, 8].
    out_ref[...] = (
        jnp.dot(h2.astype(jnp.bfloat16), w3_ref[...],
                preferred_element_type=jnp.float32)
        + b3_ref[...]
    ).astype(out_ref.dtype)


def _round_up(x, m):
    return ((x + m - 1) // m) * m


def init_params(key, in_features, out_features, hidden_features=HIDDEN):
    """Deterministic layer_init-style parameters (scaled normal, zero bias)."""
    k1, k2, k3 = jax.random.split(key, 3)
    std1 = jnp.sqrt(2.0)
    std2 = jnp.sqrt(2.0)
    std3 = 0.01
    # Stored as [fan_in, fan_out] (transposed vs. torch nn.Linear's [out, in]).
    w1 = std1 * jax.random.normal(k1, (in_features, hidden_features), jnp.float32) / jnp.sqrt(in_features)
    w2 = std2 * jax.random.normal(k2, (hidden_features, hidden_features), jnp.float32) / jnp.sqrt(hidden_features)
    w3 = std3 * jax.random.normal(k3, (hidden_features, out_features), jnp.float32) / jnp.sqrt(hidden_features)
    b1 = jnp.zeros((1, hidden_features), jnp.float32)
    b2 = jnp.zeros((1, hidden_features), jnp.float32)
    b3 = jnp.zeros((1, out_features), jnp.float32)
    return (w1, b1, w2, b2, w3, b3)


def prepare_params(params):
    """One-time weight prep (hoisted out of the per-step forward path):
    bf16 matmul operands + logits head padded to 8 columns, biases kept f32."""
    w1, b1, w2, b2, w3, b3 = params
    out_f = w3.shape[1]
    out_pad = _round_up(max(out_f, 8), 8)
    if out_pad != out_f:
        w3 = jnp.pad(w3, ((0, 0), (0, out_pad - out_f)))
        b3 = jnp.pad(b3, ((0, 0), (0, out_pad - out_f)))
    return (
        w1.astype(jnp.bfloat16), b1.astype(jnp.float32),
        w2.astype(jnp.bfloat16), b2.astype(jnp.float32),
        w3.astype(jnp.bfloat16), b3.astype(jnp.float32),
    )


def state_to_action_logits(obs, prepared_params, out_features, tb=2048, split_at=512):
    """obs: [B, in_features] f32, prepared_params from prepare_params()
    -> logits [B, out_features] f32."""
    w1, b1, w2, b2, w3, b3 = prepared_params
    B, in_f = obs.shape
    H = w1.shape[1]
    out_pad = w3.shape[1]

    # ---- Batch tiling. ----
    if B <= split_at:
        # Deployment path: single tile; block batch dim == full array dim, so no
        # divisibility constraint and no padding.
        TB = B
    else:
        # Large rollout batches: >= 2 tiles (keeps both v7x TensorCores busy),
        # tile rows a multiple of 8, capped at `tb`.  Ragged last tile is fine:
        # out-of-bounds rows are masked on store.
        TB = min(tb, _round_up(pl.cdiv(B, 2), 8))
    grid = (pl.cdiv(B, TB),)

    # Weights/biases: constant block index -> stay VMEM-resident across steps.
    const = lambda shape: pl.BlockSpec(shape, lambda i: (0, 0))

    cost = pl.CostEstimate(
        flops=2 * B * (in_f * H + H * H + H * out_pad),
        transcendentals=2 * B * H,
        bytes_accessed=(B * in_f * 4 + B * out_pad * 4                 # obs in, logits out (f32)
                        + (in_f * H + H * H + H * out_pad) * 2         # bf16 weights
                        + (2 * H + out_pad) * 4),                      # f32 biases
    )

    logits_padded = pl.pallas_call(
        _mlp_kernel,
        out_shape=jax.ShapeDtypeStruct((B, out_pad), jnp.float32),
        grid_spec=pltpu.PrefetchScalarGridSpec(
            num_scalar_prefetch=0,
            grid=grid,
            in_specs=[
                pl.BlockSpec((TB, in_f), lambda i: (i, 0)),   # obs: batch-tiled, f32
                const(w1.shape),
                const(b1.shape),
                const(w2.shape),
                const(b2.shape),
                const(w3.shape),
                const(b3.shape),
            ],
            out_specs=pl.BlockSpec((TB, out_pad), lambda i: (i, 0)),
        ),
        compiler_params=pltpu.CompilerParams(
            # Batch tiles are independent: shard across v7x's 2 TCs.
            dimension_semantics=("parallel",),
        ),
        cost_estimate=cost,
    )(obs, w1, b1, w2, b2, w3, b3)

    return logits_padded[:, :out_features]


def _reference(obs, params):
    w1, b1, w2, b2, w3, b3 = params
    h = jnp.tanh(obs @ w1 + b1)
    h = jnp.tanh(h @ w2 + b2)
    return h @ w3 + b3


if __name__ == "__main__":
    key = jax.random.PRNGKey(0)
    k_obs, k_params, k_big = jax.random.split(key, 3)

    # Lunar-Lander sizes: observation dim 8, 4 discrete actions.
    in_features, out_features = 8, 4
    raw_params = init_params(k_params, in_features, out_features)
    prepared = prepare_params(raw_params)   # one-time prep, hoisted out of forward

    # --- deployment-size batch (single tile) ---
    B = 8
    obs = jax.random.normal(k_obs, (B, in_features), jnp.float32)
    logits = state_to_action_logits(obs, prepared, out_features)
    jax.block_until_ready(logits)
    ref = _reference(obs, raw_params)
    assert logits.shape == (B, out_features)
    assert jnp.allclose(logits, ref, atol=3e-3, rtol=3e-2), (
        float(jnp.max(jnp.abs(logits - ref))))

    # --- larger batch: exercises 2-tile grid + ragged (masked) final tile ---
    B_big = 1000
    obs_big = jax.random.normal(k_big, (B_big, in_features), jnp.float32)
    logits_big = state_to_action_logits(obs_big, prepared, out_features, split_at=512)
    jax.block_until_ready(logits_big)
    ref_big = _reference(obs_big, raw_params)
    assert logits_big.shape == (B_big, out_features)
    assert jnp.allclose(logits_big, ref_big, atol=3e-3, rtol=3e-2), (
        float(jnp.max(jnp.abs(logits_big - ref_big))))

    print("KERNEL_OK")
</pallas_src>

<mosaic_0001>
module attributes {stable_mosaic.version = 11 : i64} {
  func.func @_mlp_kernel(%arg0: i32, %arg1: memref<8x8xf32, #tpu.memory_space<vmem>>, %arg2: memref<8x64xbf16, #tpu.memory_space<vmem>>, %arg3: memref<1x64xf32, #tpu.memory_space<vmem>>, %arg4: memref<64x64xbf16, #tpu.memory_space<vmem>>, %arg5: memref<1x64xf32, #tpu.memory_space<vmem>>, %arg6: memref<64x8xbf16, #tpu.memory_space<vmem>>, %arg7: memref<1x8xf32, #tpu.memory_space<vmem>>, %arg8: memref<8x8xf32, #tpu.memory_space<vmem>>) attributes {dimension_semantics = [#tpu.dimension_semantics<parallel>], iteration_bounds = array<i64: 1>, scalar_prefetch = 0 : i64, scratch_operands = 0 : i64, tpu.core_type = #tpu.core_type<tc>, window_params = [{transform_indices = @transform_0, window_bounds = array<i64: 8, 8>}, {pipeline_mode = #tpu.pipeline_mode<synchronous>, transform_indices = @transform_1, window_bounds = array<i64: 8, 64>}, {pipeline_mode = #tpu.pipeline_mode<synchronous>, transform_indices = @transform_2, window_bounds = array<i64: 1, 64>}, {pipeline_mode = #tpu.pipeline_mode<synchronous>, transform_indices = @transform_3, window_bounds = array<i64: 64, 64>}, {pipeline_mode = #tpu.pipeline_mode<synchronous>, transform_indices = @transform_4, window_bounds = array<i64: 1, 64>}, {pipeline_mode = #tpu.pipeline_mode<synchronous>, transform_indices = @transform_5, window_bounds = array<i64: 64, 8>}, {pipeline_mode = #tpu.pipeline_mode<synchronous>, transform_indices = @transform_6, window_bounds = array<i64: 1, 8>}, {transform_indices = @transform_7, window_bounds = array<i64: 8, 8>}]} {
    %c0 = arith.constant 0 : index
    %c0_0 = arith.constant 0 : index
    %0 = vector.load %arg1[%c0, %c0_0] : memref<8x8xf32, #tpu.memory_space<vmem>>, vector<8x8xf32>
    %1 = arith.truncf %0 : vector<8x8xf32> to vector<8x8xbf16>
    %c0_1 = arith.constant 0 : index
    %c0_2 = arith.constant 0 : index
    %2 = vector.load %arg2[%c0_1, %c0_2] : memref<8x64xbf16, #tpu.memory_space<vmem>>, vector<8x64xbf16>
    %cst = arith.constant dense<0.000000e+00> : vector<8x64xf32>
    %3 = tpu.matmul %1, %2, %cst {dimension_numbers = #tpu.dot_dimension_numbers<[1], [0], [0], [1], [0, 0, 1, 1], [], []>} : vector<8x8xbf16>, vector<8x64xbf16>, vector<8x64xf32> -> vector<8x64xf32>
    %c0_3 = arith.constant 0 : index
    %c0_4 = arith.constant 0 : index
    %4 = vector.load %arg3[%c0_3, %c0_4] : memref<1x64xf32, #tpu.memory_space<vmem>>, vector<1x64xf32>
    %5 = vector.broadcast %4 : vector<1x64xf32> to vector<8x64xf32>
    %6 = arith.addf %3, %5 : vector<8x64xf32>
    %7 = math.tanh %6 : vector<8x64xf32>
    %8 = arith.truncf %7 : vector<8x64xf32> to vector<8x64xbf16>
    %c0_5 = arith.constant 0 : index
    %c0_6 = arith.constant 0 : index
    %9 = vector.load %arg4[%c0_5, %c0_6] : memref<64x64xbf16, #tpu.memory_space<vmem>>, vector<64x64xbf16>
    %cst_7 = arith.constant dense<0.000000e+00> : vector<8x64xf32>
    %10 = tpu.matmul %8, %9, %cst_7 {dimension_numbers = #tpu.dot_dimension_numbers<[1], [0], [0], [1], [0, 0, 1, 1], [], []>} : vector<8x64xbf16>, vector<64x64xbf16>, vector<8x64xf32> -> vector<8x64xf32>
    %c0_8 = arith.constant 0 : index
    %c0_9 = arith.constant 0 : index
    %11 = vector.load %arg5[%c0_8, %c0_9] : memref<1x64xf32, #tpu.memory_space<vmem>>, vector<1x64xf32>
    %12 = vector.broadcast %11 : vector<1x64xf32> to vector<8x64xf32>
    %13 = arith.addf %10, %12 : vector<8x64xf32>
    %14 = math.tanh %13 : vector<8x64xf32>
    %15 = arith.truncf %14 : vector<8x64xf32> to vector<8x64xbf16>
    %c0_10 = arith.constant 0 : index
    %c0_11 = arith.constant 0 : index
    %16 = vector.load %arg6[%c0_10, %c0_11] : memref<64x8xbf16, #tpu.memory_space<vmem>>, vector<64x8xbf16>
    %cst_12 = arith.constant dense<0.000000e+00> : vector<8x8xf32>
    %17 = tpu.matmul %15, %16, %cst_12 {dimension_numbers = #tpu.dot_dimension_numbers<[1], [0], [0], [1], [0, 0, 1, 1], [], []>} : vector<8x64xbf16>, vector<64x8xbf16>, vector<8x8xf32> -> vector<8x8xf32>
    %c0_13 = arith.constant 0 : index
    %c0_14 = arith.constant 0 : index
    %18 = vector.load %arg7[%c0_13, %c0_14] : memref<1x8xf32, #tpu.memory_space<vmem>>, vector<1x8xf32>
    %19 = vector.broadcast %18 : vector<1x8xf32> to vector<8x8xf32>
    %20 = arith.addf %17, %19 : vector<8x8xf32>
    %c0_15 = arith.constant 0 : index
    %c0_16 = arith.constant 0 : index
    %21 = vector.load %arg8[%c0_15, %c0_16] : memref<8x8xf32, #tpu.memory_space<vmem>>, vector<8x8xf32>
    tpu.vector_store %arg8[%c0_15, %c0_16], %20 {strides = array<i32>} : memref<8x8xf32, #tpu.memory_space<vmem>>, vector<8x8xf32>,
    return
  }
  func.func @transform_0(%arg0: i32) -> (i32, i32) {
    %c0_i32 = arith.constant 0 : i32
    %c0_i32_0 = arith.constant 0 : i32
    return %arg0, %c0_i32 : i32, i32
  }
  func.func @transform_1(%arg0: i32) -> (i32, i32) {
    %c0_i32 = arith.constant 0 : i32
    %c0_i32_0 = arith.constant 0 : i32
    %c0_i32_1 = arith.constant 0 : i32
    return %c0_i32, %c0_i32_0 : i32, i32
  }
  func.func @transform_2(%arg0: i32) -> (i32, i32) {
    %c0_i32 = arith.constant 0 : i32
    %c0_i32_0 = arith.constant 0 : i32
    %c0_i32_1 = arith.constant 0 : i32
    return %c0_i32, %c0_i32_0 : i32, i32
  }
  func.func @transform_3(%arg0: i32) -> (i32, i32) {
    %c0_i32 = arith.constant 0 : i32
    %c0_i32_0 = arith.constant 0 : i32
    %c0_i32_1 = arith.constant 0 : i32
    return %c0_i32, %c0_i32_0 : i32, i32
  }
  func.func @transform_4(%arg0: i32) -> (i32, i32) {
    %c0_i32 = arith.constant 0 : i32
    %c0_i32_0 = arith.constant 0 : i32
    %c0_i32_1 = arith.constant 0 : i32
    return %c0_i32, %c0_i32_0 : i32, i32
  }
  func.func @transform_5(%arg0: i32) -> (i32, i32) {
    %c0_i32 = arith.constant 0 : i32
    %c0_i32_0 = arith.constant 0 : i32
    %c0_i32_1 = arith.constant 0 : i32
    return %c0_i32, %c0_i32_0 : i32, i32
  }
  func.func @transform_6(%arg0: i32) -> (i32, i32) {
    %c0_i32 = arith.constant 0 : i32
    %c0_i32_0 = arith.constant 0 : i32
    %c0_i32_1 = arith.constant 0 : i32
    return %c0_i32, %c0_i32_0 : i32, i32
  }
  func.func @transform_7(%arg0: i32) -> (i32, i32) {
    %c0_i32 = arith.constant 0 : i32
    %c0_i32_0 = arith.constant 0 : i32
    return %arg0, %c0_i32 : i32, i32
  }
}

</mosaic_0001>

<llo_original>
// kernel: tpu_custom_call.1
$region0: #{tpu_custom_call.1}
  #allocation0 [shape = 'u32[]', space=smem, size = 0x4, offset = 0x4, fixed_abs, tag = 'smem constant byte address 0x4 - core index']
  #allocation1 [shape = 'u32[144,128]{1,0:T(1,128)}', space=vmem, size = 0x12000, scoped, tag = 'internal scratch']
  %s0 = inlined_call_operand.vmem [shape: f32[8,8], index: 0, kind: input, shape index: {}]
  %s1 = inlined_call_operand.vmem [shape: bf16[8,64], index: 1, kind: input, shape index: {}]
  %s2 = inlined_call_operand.vmem [shape: f32[1,64], index: 2, kind: input, shape index: {}]
  %s3 = inlined_call_operand.vmem [shape: bf16[64,64], index: 3, kind: input, shape index: {}]
  %s4 = inlined_call_operand.vmem [shape: f32[1,64], index: 4, kind: input, shape index: {}]
  %s5 = inlined_call_operand.vmem [shape: bf16[64,8], index: 5, kind: input, shape index: {}]
  %s6 = inlined_call_operand.vmem [shape: f32[1,8], index: 6, kind: input, shape index: {}]
  %s7 = inlined_call_operand.hbm [shape: f32[8,8], index: 7, kind: output, shape index: {}]
  %s8 = sld [smem:[#allocation0]]
  $region38: #{tpu_custom_call.1} parent=0
    _
  %s10 = ssub.s32 1, %s8
  %s11 = scalar_select 0, %s10, %s8
  $region1: #{tpu_custom_call.1} parent=0
    #allocation2 [shape = 'u8[4096]{0}', space=vmem, size = 0x1000, scoped, tag = 'output window, operand 0, single buffered']
    #allocation3 [shape = 's32[1]{0}', space=sflag, size = 0x4, scoped, tag = 'scoped memory for tpu_custom_call.1']
    %12 = vsyncpa [#allocation3], 0
    // Predicated region
    $region2: #{tpu_custom_call.1} parent=1 // pred_check
      _
    $region3: #{tpu_custom_call.1} parent=1 // pred_check_branch
      %14 = sbr.rel (0) target = $region5
    $region4: #{tpu_custom_call.1} parent=1 // pred_region
      _
    $region5: #{tpu_custom_call.1} parent=1 // pred_fallthru
      _
    // Predicated region
    $region6: #{tpu_custom_call.1} parent=1 // pred_check
      _
    $region7: #{tpu_custom_call.1} parent=1 // pred_check_branch
      %16 = sbr.rel (0) target = $region9
    $region8: #{tpu_custom_call.1} parent=1 // pred_region
      _
    $region9: #{tpu_custom_call.1} parent=1 // pred_fallthru
      _
    // Predicated region
    $region10: #{tpu_custom_call.1} parent=1 // pred_check
      _
    $region11: #{tpu_custom_call.1} parent=1 // pred_check_branch
      %18 = sbr.rel (0) target = $region13
    $region12: #{tpu_custom_call.1} parent=1 // pred_region
      _
    $region13: #{tpu_custom_call.1} parent=1 // pred_fallthru
      _
    // Predicated region
    $region14: #{tpu_custom_call.1} parent=1 // pred_check
      _
    $region15: #{tpu_custom_call.1} parent=1 // pred_check_branch
      %20 = sbr.rel (0) target = $region17
    $region16: #{tpu_custom_call.1} parent=1 // pred_region
      _
    $region17: #{tpu_custom_call.1} parent=1 // pred_fallthru
      _
    // Predicated region
    $region18: #{tpu_custom_call.1} parent=1 // pred_check
      _
    $region19: #{tpu_custom_call.1} parent=1 // pred_check_branch
      %22 = sbr.rel (0) target = $region21
    $region20: #{tpu_custom_call.1} parent=1 // pred_region
      _
    $region21: #{tpu_custom_call.1} parent=1 // pred_fallthru
      _
    // Predicated region
    $region22: #{tpu_custom_call.1} parent=1 // pred_check
      _
    $region23: #{tpu_custom_call.1} parent=1 // pred_check_branch
      %24 = sbr.rel (0) target = $region25
    $region24: #{tpu_custom_call.1} parent=1 // pred_region
      _
    $region25: #{tpu_custom_call.1} parent=1 // pred_fallthru
      _
    // Predicated region
    $region26: #{tpu_custom_call.1} parent=1 // pred_check
      _
    $region27: #{tpu_custom_call.1} parent=1 // pred_check_branch
      %26 = sbr.rel (0) target = $region29
    $region28: #{tpu_custom_call.1} parent=1 // pred_region
      _
    $region29: #{tpu_custom_call.1} parent=1 // pred_fallthru
      _
    %v28 = vld [vmem:[%s0] sm:$0xff]
    %v29 = vpack.c.bf16 %v28, %v28
    %v30 = vld [vmem:[%s1] sm:$0xf]
    %v31 = vld [vmem:[%s2] sm:$0x1]
    %v33 = vlaneseq
    %v34 = vshrl.u32 %v33, 7
    %v35 = vsub.s32 0, %v34
    %v36 = vrot.slane %v31, %v35
    %vm38 = vcmask 64512
    %v40 = vsel %vm38, %v29, 0
    %vm42 = vcmask 1043456
    %v44 = vsel %vm42, %v30, 0
    %46 = vmatprep.subr.bf16.mxu0 0
    %47 = vmatpush1.bf16.msra.mxu0 %v44
    %48 = vmatprep.subr.bf16.mxu0 0
    %49 = vmatpush1.bf16.msra.mxu0 0
    %50 = vmatprep.subr.bf16.mxu0 0
    %51 = vmatpush1.bf16.msra.mxu0 0
    %52 = vmatprep.subr.bf16.mxu0 0
    %53 = vmatpush1.bf16.msra.mxu0 0
    %54 = vmatprep.subr.bf16.mxu0 0
    %55 = vmatpush1.bf16.msra.mxu0 0
    %56 = vmatprep.subr.bf16.mxu0 0
    %57 = vmatpush1.bf16.msra.mxu0 0
    %58 = vmatprep.subr.bf16.mxu0 0
    %59 = vmatpush1.bf16.msra.mxu0 0
    %60 = vmatprep.subr.bf16.mxu0 0
    %61 = vmatpush1.bf16.msra.mxu0 0
    %62 = vmatprep.subr.bf16.mxu0 0
    %63 = vmatpush1.bf16.msra.mxu0 0
    %64 = vmatprep.subr.bf16.mxu0 0
    %65 = vmatpush1.bf16.msra.mxu0 0
    %66 = vmatprep.subr.bf16.mxu0 0
    %67 = vmatpush1.bf16.msra.mxu0 0
    %68 = vmatprep.subr.bf16.mxu0 0
    %69 = vmatpush1.bf16.msra.mxu0 0
    %70 = vmatprep.subr.bf16.mxu0 0
    %71 = vmatpush1.bf16.msra.mxu0 0
    %72 = vmatprep.subr.bf16.mxu0 0
    %73 = vmatpush1.bf16.msra.mxu0 0
    %74 = vmatprep.subr.bf16.mxu0 0
    %75 = vmatpush1.bf16.msra.mxu0 0
    %76 = vmatprep.subr.bf16.mxu0 0
    %77 = vmatpush1.bf16.msra.mxu0 0
    %78 = vmatprep.mubr.bf16.mxu0 0
    %79 = vmatmul.mubr.bf16.gmra.mrb[0].mxu0 %v40
    %v80 = vpop.f32.mrb[0].mxu0
    %v81 = vadd.f32 %v36, %v80
    %v82 = vpop.f32.mrb[0].mxu0
    %v83 = vpop.f32.mrb[0].mxu0
    %v84 = vpop.f32.mrb[0].mxu0
    %85 = vdwg.mxu0
    %v86 = vtanh.pop %v81
    %v87 = vpack.c.bf16 %v86, %v86
    %v88 = vld [vmem:[%s3] sm:$0xf]
    %v89 = vld [vmem:[%s3 + $0x4] sm:$0xf]
    %v90 = vld [vmem:[%s3 + $0x8] sm:$0xf]
    %v91 = vld [vmem:[%s3 + $0xc] sm:$0xf]
    %v92 = vld [vmem:[%s3 + $0x10] sm:$0xf]
    %v93 = vld [vmem:[%s3 + $0x14] sm:$0xf]
    %v94 = vld [vmem:[%s3 + $0x18] sm:$0xf]
    %v95 = vld [vmem:[%s3 + $0x1c] sm:$0xf]
    %v96 = vld [vmem:[%s4] sm:$0x1]
    %v98 = vlaneseq
    %v99 = vshrl.u32 %v98, 7
    %v100 = vsub.s32 0, %v99
    %v101 = vrot.slane %v96, %v100
    %v111 = vunpack.c.l.b16 %v88
    %v112 = vunpack.c.l.b16 %v89
    %v113 = vunpack.c.l.b16 %v90
    %v114 = vunpack.c.l.b16 %v91
    %v115 = vunpack.c.l.b16 %v92
    %v116 = vunpack.c.l.b16 %v93
    %v117 = vunpack.c.l.b16 %v94
    %v118 = vunpack.c.l.b16 %v95
    %v119 = vpack.c.b16 %v112, %v111
    %v120 = vpack.c.b16 %v114, %v113
    %v121 = vpack.c.b16 %v116, %v115
    %v122 = vpack.c.b16 %v118, %v117
    %vm127 = vcmask 523264
    %v129 = vsel %vm127, %v87, 0
    %131 = vmatprep.subr.bf16.mxu0 0
    %132 = vmatpush1.bf16.msra.mxu0 %v119
    %133 = vmatprep.subr.bf16.mxu0 0
    %134 = vmatpush1.bf16.msra.mxu0 %v120
    %135 = vmatprep.subr.bf16.mxu0 0
    %136 = vmatpush1.bf16.msra.mxu0 %v121
    %137 = vmatprep.subr.bf16.mxu0 0
    %138 = vmatpush1.bf16.msra.mxu0 %v122
    %139 = vmatprep.subr.bf16.mxu0 0
    %140 = vmatpush1.bf16.msra.mxu0 0
    %141 = vmatprep.subr.bf16.mxu0 0
    %142 = vmatpush1.bf16.msra.mxu0 0
    %143 = vmatprep.subr.bf16.mxu0 0
    %144 = vmatpush1.bf16.msra.mxu0 0
    %145 = vmatprep.subr.bf16.mxu0 0
    %146 = vmatpush1.bf16.msra.mxu0 0
    %147 = vmatprep.subr.bf16.mxu0 0
    %148 = vmatpush1.bf16.msra.mxu0 0
    %149 = vmatprep.subr.bf16.mxu0 0
    %150 = vmatpush1.bf16.msra.mxu0 0
    %151 = vmatprep.subr.bf16.mxu0 0
    %152 = vmatpush1.bf16.msra.mxu0 0
    %153 = vmatprep.subr.bf16.mxu0 0
    %154 = vmatpush1.bf16.msra.mxu0 0
    %155 = vmatprep.subr.bf16.mxu0 0
    %156 = vmatpush1.bf16.msra.mxu0 0
    %157 = vmatprep.subr.bf16.mxu0 0
    %158 = vmatpush1.bf16.msra.mxu0 0
    %159 = vmatprep.subr.bf16.mxu0 0
    %160 = vmatpush1.bf16.msra.mxu0 0
    %161 = vmatprep.subr.bf16.mxu0 0
    %162 = vmatpush1.bf16.msra.mxu0 0
    %163 = vmatprep.mubr.bf16.mxu0 0
    %164 = vmatmul.mubr.bf16.gmra.mrb[0].mxu0 %v129
    %v165 = vpop.f32.mrb[0].mxu0
    %v166 = vadd.f32 %v101, %v165
    %v167 = vpop.f32.mrb[0].mxu0
    %v168 = vpop.f32.mrb[0].mxu0
    %v169 = vpop.f32.mrb[0].mxu0
    %170 = vdwg.mxu0
    %v171 = vtanh.pop %v166
    %v172 = vpack.c.bf16 %v171, %v171
    %v173 = vld [vmem:[%s5] sm:$0xf]
    %v174 = vld [vmem:[%s5 + $0x4] sm:$0xf]
    %v175 = vld [vmem:[%s5 + $0x8] sm:$0xf]
    %v176 = vld [vmem:[%s5 + $0xc] sm:$0xf]
    %v177 = vld [vmem:[%s5 + $0x10] sm:$0xf]
    %v178 = vld [vmem:[%s5 + $0x14] sm:$0xf]
    %v179 = vld [vmem:[%s5 + $0x18] sm:$0xf]
    %v180 = vld [vmem:[%s5 + $0x1c] sm:$0xf]
    %v181 = vld [vmem:[%s6] sm:$0x1]
    %v183 = vlaneseq
    %v184 = vshrl.u32 %v183, 7
    %v185 = vsub.s32 0, %v184
    %v186 = vrot.slane %v181, %v185
    %v196 = vunpack.c.l.b16 %v173
    %v197 = vunpack.c.l.b16 %v174
    %v198 = vunpack.c.l.b16 %v175
    %v199 = vunpack.c.l.b16 %v176
    %v200 = vunpack.c.l.b16 %v177
    %v201 = vunpack.c.l.b16 %v178
    %v202 = vunpack.c.l.b16 %v179
    %v203 = vunpack.c.l.b16 %v180
    %v204 = vpack.c.b16 %v197, %v196
    %v205 = vpack.c.b16 %v199, %v198
    %v206 = vpack.c.b16 %v201, %v200
    %v207 = vpack.c.b16 %v203, %v202
    %v213 = vsel %vm127, %v172, 0
    %215 = vmatprep.subr.bf16.mxu0 0
    %216 = vmatpush1.bf16.msra.mxu0 %v204
    %217 = vmatprep.subr.bf16.mxu0 0
    %218 = vmatpush1.bf16.msra.mxu0 %v205
    %219 = vmatprep.subr.bf16.mxu0 0
    %220 = vmatpush1.bf16.msra.mxu0 %v206
    %221 = vmatprep.subr.bf16.mxu0 0
    %222 = vmatpush1.bf16.msra.mxu0 %v207
    %223 = vmatprep.subr.bf16.mxu0 0
    %224 = vmatpush1.bf16.msra.mxu0 0
    %225 = vmatprep.subr.bf16.mxu0 0
    %226 = vmatpush1.bf16.msra.mxu0 0
    %227 = vmatprep.subr.bf16.mxu0 0
    %228 = vmatpush1.bf16.msra.mxu0 0
    %229 = vmatprep.subr.bf16.mxu0 0
    %230 = vmatpush1.bf16.msra.mxu0 0
    %231 = vmatprep.subr.bf16.mxu0 0
    %232 = vmatpush1.bf16.msra.mxu0 0
    %233 = vmatprep.subr.bf16.mxu0 0
    %234 = vmatpush1.bf16.msra.mxu0 0
    %235 = vmatprep.subr.bf16.mxu0 0
    %236 = vmatpush1.bf16.msra.mxu0 0
    %237 = vmatprep.subr.bf16.mxu0 0
    %238 = vmatpush1.bf16.msra.mxu0 0
    %239 = vmatprep.subr.bf16.mxu0 0
    %240 = vmatpush1.bf16.msra.mxu0 0
    %241 = vmatprep.subr.bf16.mxu0 0
    %242 = vmatpush1.bf16.msra.mxu0 0
    %243 = vmatprep.subr.bf16.mxu0 0
    %244 = vmatpush1.bf16.msra.mxu0 0
    %245 = vmatprep.subr.bf16.mxu0 0
    %246 = vmatpush1.bf16.msra.mxu0 0
    %247 = vmatprep.mubr.bf16.mxu0 0
    %248 = vmatmul.mubr.bf16.gmra.mrb[0].mxu0 %v213
    %v249 = vpop.f32.mrb[0].mxu0
    %v250 = vadd.f32 %v186, %v249
    %v251 = vpop.f32.mrb[0].mxu0
    %v252 = vpop.f32.mrb[0].mxu0
    %v253 = vpop.f32.mrb[0].mxu0
    %254 = vdwg.mxu0
    %255 = vst.msk [vmem:[#allocation2] sm:$0xff] %vm38, %v250
    // Predicated region
    $region30: #{tpu_custom_call.1} parent=1 // pred_check
      _
    $region31: #{tpu_custom_call.1} parent=1 // pred_check_branch
      %257 = sbr.rel (0) target = $region33
    $region32: #{tpu_custom_call.1} parent=1 // pred_region
      %s259 = ssub.s32 128, 128
      %260 = vsyncadd [#allocation3], %s259
      %s262 = sshll.u32 [#allocation2], 4
      %s263 = int_to_ptr.vmem [resolvable:$true] %s262
      %265 = dma.vmem_to_hbm [thread:$0]  %s263, 128, %s7, [#allocation3]
    $region33: #{tpu_custom_call.1} parent=1 // pred_fallthru
      _
    // Predicated region
    $region34: #{tpu_custom_call.1} parent=1 // pred_check
      _
    $region35: #{tpu_custom_call.1} parent=1 // pred_check_branch
      %267 = sbr.rel (0) target = $region37
    $region36: #{tpu_custom_call.1} parent=1 // pred_region
      %268 = dma.done [#allocation3], 128
    $region37: #{tpu_custom_call.1} parent=1 // pred_fallthru
      _
    %269 = vsyncpa [#allocation3], 1

</llo_original>
